<compile_context>
chip_gen: v5e
topology: v5e:2x2
jax: 0.10.0
libtpu: 0.0.40
codegen_flags: <defaults>
</compile_context>

<pallas_src>
import functools

import jax
import jax.numpy as jnp
from jax.experimental import pallas as pl
from jax.experimental.pallas import tpu as pltpu


def _line_agc_kernel(x_ref, k_ref, w_ref, b_ref, o_ref):
    # x_ref: [1, Tblk, M*D] (stream dtype)   k_ref: [1, M*D, M*D] (stream dtype)
    # w_ref: [M*D, M*L]     (stream dtype)   b_ref: [1, M*L]      (f32)
    # o_ref: [1, Tblk, M*L] (out dtype)
    x = x_ref[0]                                                   # [Tblk, M*D]
    k = k_ref[0]                                                   # [M*D, M*D]

    # Graph mixing for the whole time tile: one wide MXU matmul, f32 accumulate.
    h = jnp.dot(x, k, preferred_element_type=jnp.float32)         # [Tblk, M*D]

    # Per-node weights folded into one block-diagonal MXU matmul.  Feed the MXU
    # operands in the streamed dtype, keep the accumulation in f32.
    y = jnp.dot(h.astype(w_ref.dtype), w_ref[...],
                preferred_element_type=jnp.float32)                # [Tblk, M*L]

    # Bias + ReLU; store is lane-dense (last dim = M*out_dim, multiple of 128).
    y = jnp.maximum(y + b_ref[...], 0.0)
    o_ref[0] = y.astype(o_ref.dtype)


def _round_up(n, m):
    return ((n + m - 1) // m) * m


def _vmem_limit_bytes():
    """Per-generation scoped-VMEM target."""
    try:
        phys = pltpu.get_tpu_info().vmem_capacity_bytes
    except Exception:
        return 32 * 1024 * 1024                       # safe fallback
    if phys >= 128 * 1024 * 1024:                     # v5e / v6e (128 MiB)
        return 64 * 1024 * 1024
    return min((3 * phys) // 4, 48 * 1024 * 1024)     # v7x (64 MiB physical)


def _pick_t_block(T, B, per_row_bytes, budget_bytes):
    """Largest time-tile whose pipelined buffers + intermediates fit the budget."""
    cap = budget_bytes // max(per_row_bytes, 1)
    cap = max(16, min(cap, 1024))        # DMA efficiency plateaus at ~512-1024 rows
    cap -= cap % 16                      # bf16 packs 16 sublanes per vreg
    t_blk = min(_round_up(T, 8), cap)
    # v7x megacore: when B == 1, keep >= 2 parallel grid steps along T so both
    # TensorCores get work (irrelevant on single-TC v5e/v6e).
    if B == 1 and T > 16:
        t_blk = min(t_blk, _round_up((T + 1) // 2, 16))
    return max(t_blk, 8)


@functools.partial(jax.jit, static_argnames=("stream_dtype", "out_dtype"))
def line_agc(x, adj, route_weights, route_bias,
             stream_dtype=jnp.bfloat16, out_dtype=None):
    """x: [B, T, M, in_dim], adj: [B, M, M] -> [B, T, M, out_dim]."""
    B, T, M, D = x.shape
    L = route_weights.shape[-1]
    MD, ML = M * D, M * L
    out_dtype = x.dtype if out_dtype is None else out_dtype

    # ---- wrapper-side layout plumbing / parameter packing (pure XLA) --------
    x_flat = x.reshape(B, T, MD).astype(stream_dtype)              # [B, T, M*D]

    eye_d = jnp.eye(D, dtype=jnp.float32)
    # K[b, n*D + d', m*D + d] = adj[b, m, n] * (d' == d)  == kron(adj[b].T, I_D)
    k_big = (adj.transpose(0, 2, 1)[:, :, None, :, None]
             * eye_d[None, None, :, None, :]
             ).reshape(B, MD, MD).astype(stream_dtype)

    eye_m = jnp.eye(M, dtype=jnp.float32)
    # W_bd[m*D + d, m'*L + l] = W[m, d, l] * (m == m')   (block diagonal)
    w_bd = (route_weights[:, :, None, :]
            * eye_m[:, None, :, None]).reshape(MD, ML).astype(stream_dtype)

    bias_flat = route_bias.reshape(1, ML).astype(jnp.float32)      # [1, M*L]

    # ---- tiling --------------------------------------------------------------
    s_bytes = jnp.dtype(stream_dtype).itemsize
    o_bytes = jnp.dtype(out_dtype).itemsize
    vmem_limit = _vmem_limit_bytes()

    k_block_bytes = MD * MD * s_bytes
    k_single_buffered = k_block_bytes > (4 << 20)    # only matters at large M
    resident = ((1 if k_single_buffered else 2) * k_block_bytes    # K[b]
                + 2 * MD * ML * s_bytes                            # W_bd
                + 2 * ML * 4)                                      # bias
    # Per-time-row cost: double-buffered x + out blocks plus the f32
    # intermediates (h and the pre-cast accumulator).
    per_row = 2 * MD * s_bytes + 2 * ML * o_bytes + 4 * MD + 4 * ML
    budget = max(vmem_limit // 2 - resident, 1 << 20)
    t_blk = _pick_t_block(T, B, per_row, budget)

    T_pad = _round_up(T, t_blk)
    if T_pad != T:
        x_flat = jnp.pad(x_flat, ((0, 0), (0, T_pad - T), (0, 0)))
    grid = (B, T_pad // t_blk)

    flops = 2 * B * T_pad * (MD * MD + MD * ML)
    bytes_accessed = (x_flat.size * s_bytes + k_big.size * s_bytes
                      + w_bd.size * s_bytes + bias_flat.size * 4
                      + B * T_pad * ML * o_bytes)

    k_spec_kwargs = {}
    if k_single_buffered:
        k_spec_kwargs["pipeline_mode"] = pl.Buffered(1)

    y_flat = pl.pallas_call(
        _line_agc_kernel,
        out_shape=jax.ShapeDtypeStruct((B, T_pad, ML), out_dtype),
        grid_spec=pltpu.PrefetchScalarGridSpec(
            num_scalar_prefetch=0,
            grid=grid,
            in_specs=[
                pl.BlockSpec((1, t_blk, MD), lambda b, t: (b, t, 0)),   # x
                pl.BlockSpec((1, MD, MD), lambda b, t: (b, 0, 0),       # K[b]
                             **k_spec_kwargs),
                pl.BlockSpec((MD, ML), lambda b, t: (0, 0)),            # W_bd
                pl.BlockSpec((1, ML), lambda b, t: (0, 0)),             # bias
            ],
            out_specs=pl.BlockSpec((1, t_blk, ML), lambda b, t: (b, t, 0)),
        ),
        compiler_params=pltpu.CompilerParams(
            dimension_semantics=("parallel", "parallel"),
            vmem_limit_bytes=vmem_limit,
        ),
        cost_estimate=pl.CostEstimate(
            flops=flops, transcendentals=0, bytes_accessed=bytes_accessed),
    )(x_flat, k_big, w_bd, bias_flat)

    return y_flat[:, :T].reshape(B, T, M, L)


def line_agc_ref(x, adj, route_weights, route_bias):
    """Pure-JAX reference mirroring the PyTorch forward."""
    h = jnp.einsum('bmn,btnd->btmd', adj, x)
    ht = jnp.einsum('btmd,mdl->btml', h, route_weights)
    return jax.nn.relu(ht + route_bias[None])   # bias [1, M, out_dim] broadcasts


if __name__ == "__main__":
    # Small shapes consistent with the module's forward.
    B, T, M, in_dim, out_dim = 2, 8, 16, 4, 32

    key = jax.random.PRNGKey(0)
    kx, ka, kw, kb = jax.random.split(key, 4)

    x = jax.random.normal(kx, (B, T, M, in_dim), dtype=jnp.float32)
    adj = jax.nn.softmax(
        jax.random.normal(ka, (B, M, M), dtype=jnp.float32), axis=-1)

    # Deterministic parameter init (matches torch.randn shapes in __init__).
    route_weights = jax.random.normal(kw, (M, in_dim, out_dim), dtype=jnp.float32)
    route_bias = jax.random.normal(kb, (1, M, out_dim), dtype=jnp.float32)

    ref = line_agc_ref(x, adj, route_weights, route_bias)

    # Exact-precision path (stream in f32): tight tolerance check.
    out_f32 = jax.block_until_ready(
        line_agc(x, adj, route_weights, route_bias, stream_dtype=jnp.float32))
    assert out_f32.shape == (B, T, M, out_dim)
    assert jnp.allclose(out_f32, ref, atol=1e-4, rtol=1e-4)

    # Default bf16-streamed path (f32 accumulation): looser tolerance.
    out = jax.block_until_ready(line_agc(x, adj, route_weights, route_bias))
    assert out.shape == (B, T, M, out_dim)
    assert jnp.allclose(out, ref, atol=5e-2, rtol=5e-2)

    print("KERNEL_OK")
</pallas_src>

<mosaic_0001>
module attributes {stable_mosaic.version = 11 : i64} {
  func.func @_line_agc_kernel(%arg0: i32, %arg1: i32, %arg2: memref<1x8x64xf32, #tpu.memory_space<vmem>>, %arg3: memref<1x64x64xf32, #tpu.memory_space<vmem>>, %arg4: memref<64x512xf32, #tpu.memory_space<vmem>>, %arg5: memref<1x512xf32, #tpu.memory_space<vmem>>, %arg6: memref<1x8x512xf32, #tpu.memory_space<vmem>>) attributes {dimension_semantics = [#tpu.dimension_semantics<parallel>, #tpu.dimension_semantics<parallel>], iteration_bounds = array<i64: 2, 1>, scalar_prefetch = 0 : i64, scratch_operands = 0 : i64, tpu.core_type = #tpu.core_type<tc>, window_params = [{transform_indices = @transform_0, window_bounds = array<i64: 1, 8, 64>}, {transform_indices = @transform_1, window_bounds = array<i64: 1, 64, 64>}, {pipeline_mode = #tpu.pipeline_mode<synchronous>, transform_indices = @transform_2, window_bounds = array<i64: 64, 512>}, {pipeline_mode = #tpu.pipeline_mode<synchronous>, transform_indices = @transform_3, window_bounds = array<i64: 1, 512>}, {transform_indices = @transform_4, window_bounds = array<i64: 1, 8, 512>}]} {
    %c0 = arith.constant 0 : index
    %c0_0 = arith.constant 0 : index
    %c0_1 = arith.constant 0 : index
    %0 = vector.load %arg2[%c0, %c0_0, %c0_1] : memref<1x8x64xf32, #tpu.memory_space<vmem>>, vector<1x8x64xf32>
    %1 = vector.shape_cast %0 : vector<1x8x64xf32> to vector<8x64xf32>
    %c0_2 = arith.constant 0 : index
    %c0_3 = arith.constant 0 : index
    %c0_4 = arith.constant 0 : index
    %2 = vector.load %arg3[%c0_2, %c0_3, %c0_4] : memref<1x64x64xf32, #tpu.memory_space<vmem>>, vector<1x64x64xf32>
    %3 = vector.shape_cast %2 : vector<1x64x64xf32> to vector<64x64xf32>
    %cst = arith.constant dense<0.000000e+00> : vector<8x64xf32>
    %4 = tpu.matmul %1, %3, %cst {dimension_numbers = #tpu.dot_dimension_numbers<[1], [0], [0], [1], [0, 0, 1, 1], [], []>} : vector<8x64xf32>, vector<64x64xf32>, vector<8x64xf32> -> vector<8x64xf32>
    %c0_5 = arith.constant 0 : index
    %c0_6 = arith.constant 0 : index
    %5 = vector.load %arg4[%c0_5, %c0_6] : memref<64x512xf32, #tpu.memory_space<vmem>>, vector<64x512xf32>
    %cst_7 = arith.constant dense<0.000000e+00> : vector<8x512xf32>
    %6 = tpu.matmul %4, %5, %cst_7 {dimension_numbers = #tpu.dot_dimension_numbers<[1], [0], [0], [1], [0, 0, 1, 1], [], []>} : vector<8x64xf32>, vector<64x512xf32>, vector<8x512xf32> -> vector<8x512xf32>
    %c0_8 = arith.constant 0 : index
    %c0_9 = arith.constant 0 : index
    %7 = vector.load %arg5[%c0_8, %c0_9] : memref<1x512xf32, #tpu.memory_space<vmem>>, vector<1x512xf32>
    %8 = vector.broadcast %7 : vector<1x512xf32> to vector<8x512xf32>
    %9 = arith.addf %6, %8 : vector<8x512xf32>
    %cst_10 = arith.constant 0.000000e+00 : f32
    %10 = vector.broadcast %cst_10 : f32 to vector<8x512xf32>
    %11 = arith.maximumf %9, %10 : vector<8x512xf32>
    %c0_11 = arith.constant 0 : index
    %c0_12 = arith.constant 0 : index
    %c0_13 = arith.constant 0 : index
    %12 = vector.load %arg6[%c0_11, %c0_12, %c0_13] : memref<1x8x512xf32, #tpu.memory_space<vmem>>, vector<1x8x512xf32>
    %13 = vector.shape_cast %12 : vector<1x8x512xf32> to vector<8x512xf32>
    %14 = vector.shape_cast %11 : vector<8x512xf32> to vector<1x8x512xf32>
    tpu.vector_store %arg6[%c0_11, %c0_12, %c0_13], %14 {strides = array<i32>} : memref<1x8x512xf32, #tpu.memory_space<vmem>>, vector<1x8x512xf32>,
    return
  }
  func.func @transform_0(%arg0: i32, %arg1: i32) -> (i32, i32, i32) {
    %c0_i32 = arith.constant 0 : i32
    %c0_i32_0 = arith.constant 0 : i32
    return %arg0, %arg1, %c0_i32 : i32, i32, i32
  }
  func.func @transform_1(%arg0: i32, %arg1: i32) -> (i32, i32, i32) {
    %c0_i32 = arith.constant 0 : i32
    %c0_i32_0 = arith.constant 0 : i32
    %c0_i32_1 = arith.constant 0 : i32
    return %arg0, %c0_i32, %c0_i32_0 : i32, i32, i32
  }
  func.func @transform_2(%arg0: i32, %arg1: i32) -> (i32, i32) {
    %c0_i32 = arith.constant 0 : i32
    %c0_i32_0 = arith.constant 0 : i32
    %c0_i32_1 = arith.constant 0 : i32
    return %c0_i32, %c0_i32_0 : i32, i32
  }
  func.func @transform_3(%arg0: i32, %arg1: i32) -> (i32, i32) {
    %c0_i32 = arith.constant 0 : i32
    %c0_i32_0 = arith.constant 0 : i32
    %c0_i32_1 = arith.constant 0 : i32
    return %c0_i32, %c0_i32_0 : i32, i32
  }
  func.func @transform_4(%arg0: i32, %arg1: i32) -> (i32, i32, i32) {
    %c0_i32 = arith.constant 0 : i32
    %c0_i32_0 = arith.constant 0 : i32
    return %arg0, %arg1, %c0_i32 : i32, i32, i32
  }
}

</mosaic_0001>

<llo_original>
// kernel: line_agc.1
$region0: #{line_agc.1}
  #allocation0 [shape = 'u32[]', space=smem, size = 0x4, offset = 0x4, fixed_abs, tag = 'smem constant byte address 0x4 - core index']
  #allocation1 [shape = 'u32[72,128]{1,0:T(1,128)}', space=vmem, size = 0x9000, scoped, tag = 'internal scratch']
  %s0 = inlined_call_operand.vmem [shape: f32[2,8,64], index: 0, kind: input, shape index: {}]
  %s1 = inlined_call_operand.vmem [shape: f32[2,64,64], index: 1, kind: input, shape index: {}]
  %s2 = inlined_call_operand.vmem [shape: f32[64,512], index: 2, kind: input, shape index: {}]
  %s3 = inlined_call_operand.vmem [shape: f32[1,512], index: 3, kind: input, shape index: {}]
  %s4 = inlined_call_operand.vmem [shape: f32[2,8,512], index: 4, kind: output, shape index: {}]
  %s5 = sld [smem:[#allocation0]]
  $region49: #{line_agc.1} parent=0
    _
  %s7 = ssub.s32 1, %s5
  %s8 = scalar_select 0, %s7, %s5
  loop: start=0, step=1, limit=4
  $region2: #{line_agc.1} parent=0 // loop_pre_header
    _
  $region3: #{line_agc.1} parent=0 // loop_header
    %s10 = sphi 0, %s14
    %p11 = scmp.ge.s32.totalorder %s10, 4
    %s17 = sphi 0, %s29
    %s18 = sphi 0, %s25
    %s19 = sphi 0, %s17
    %s20 = sphi 0, %s18
    %s21 = sphi 0, %s19
    %s22 = sphi 0, %s20
    %s34 = sphi 0, %s36
    %s37 = sphi 0, %s34
    %s38 = sphi 0, %s37
    %s54 = sphi 0, %s38
    %s60 = sphi 0, %s62
    %s63 = sphi 0, %s60
    %s64 = sphi 0, %s63
    %s80 = sphi 0, %s64
    %s84 = sphi 0, %s84
    %s86 = sphi 0, %s84
    %s87 = sphi 0, %s86
    %s101 = sphi 0, %s87
    %s105 = sphi 0, %s105
    %s107 = sphi 0, %s105
    %s108 = sphi 0, %s107
    %s122 = sphi 0, %s108
    %s130 = sphi 0, %s132
    %s133 = sphi 0, %s130
    %s134 = sphi 0, %s133
    %s150 = sphi 0, %s134
  $region4: #{line_agc.1} parent=0 // loop_header_branch
    %13 = sbr.rel (%p11) target = $region8
  $region5: #{line_agc.1} parent=0 // loop_body
    %s15 = ssub.s32 %s10, 1
    %s16 = ssub.s32 %s10, 2
    %s23 = sadd.s32 1, %s18
    %p24 = scmp.ge.s32.totalorder %s23, 1
    %s25 = scalar_select %p24, 0, %s23
    %s26 = sadd.s32 1, %s17
    %s27 = scalar_select %p24, %s26, %s17
    %p28 = scmp.ge.s32.totalorder %s27, 2
    %s29 = scalar_select %p28, 0, %s27
    %s30 = ssub.s32 %s17, %s29
    %s31 = ssub.s32 %s18, %s25
    %s32 = sor.u32 %s30, %s31
    %p33 = scmp.eq.s32.totalorder %s32, 0
    %s35 = sadd.s32 %s34, 1
    %s36 = scalar_select %p33, %s34, %s35
    %p39 = pneg %p33
    %p40 = scmp.eq.s32.totalorder %s10, 1
    %p41 = por %p39, %p40
    %p42 = scmp.ne.s32.totalorder %s34, %s37
    %p43 = scmp.eq.s32.totalorder %s10, 0
    %p44 = por %p42, %p43
    %p45 = scmp.ne.s32.totalorder %s34, %s37
    %p46 = scmp.eq.s32.totalorder %s15, 1
    %p47 = por %p45, %p46
    %p48 = scmp.ne.s32.totalorder %s37, %s38
    %p49 = scmp.eq.s32.totalorder %s15, 0
    %p50 = por %p48, %p49
    %p51 = scmp.ne.s32.totalorder %s37, %s38
    %p52 = scmp.eq.s32.totalorder %s16, 1
    %p53 = por %p51, %p52
    %p55 = scmp.ne.s32.totalorder %s38, %s54
    %p56 = scmp.eq.s32.totalorder %s16, 0
    %p57 = por %p55, %p56
    %s58 = ssub.s32 %s17, %s29
    %p59 = scmp.eq.s32.totalorder %s58, 0
    %s61 = sadd.s32 %s60, 1
    %s62 = scalar_select %p59, %s60, %s61
    %p65 = pneg %p59
    %p66 = scmp.eq.s32.totalorder %s10, 1
    %p67 = por %p65, %p66
    %p68 = scmp.ne.s32.totalorder %s60, %s63
    %p69 = scmp.eq.s32.totalorder %s10, 0
    %p70 = por %p68, %p69
    %p71 = scmp.ne.s32.totalorder %s60, %s63
    %p72 = scmp.eq.s32.totalorder %s15, 1
    %p73 = por %p71, %p72
    %p74 = scmp.ne.s32.totalorder %s63, %s64
    %p75 = scmp.eq.s32.totalorder %s15, 0
    %p76 = por %p74, %p75
    %p77 = scmp.ne.s32.totalorder %s63, %s64
    %p78 = scmp.eq.s32.totalorder %s16, 1
    %p79 = por %p77, %p78
    %p81 = scmp.ne.s32.totalorder %s64, %s80
    %p82 = scmp.eq.s32.totalorder %s16, 0
    %p83 = por %p81, %p82
    %s85 = sadd.s32 %s84, 1
    %p88 = scmp.eq.s32.totalorder %s10, 1
    %p89 = scmp.ne.s32.totalorder %s84, %s86
    %p90 = scmp.eq.s32.totalorder %s10, 0
    %p91 = por %p89, %p90
    %p92 = scmp.ne.s32.totalorder %s84, %s86
    %p93 = scmp.eq.s32.totalorder %s15, 1
    %p94 = por %p92, %p93
    %p95 = scmp.ne.s32.totalorder %s86, %s87
    %p96 = scmp.eq.s32.totalorder %s15, 0
    %p97 = por %p95, %p96
    %p98 = scmp.ne.s32.totalorder %s86, %s87
    %p99 = scmp.eq.s32.totalorder %s16, 1
    %p100 = por %p98, %p99
    %p102 = scmp.ne.s32.totalorder %s87, %s101
    %p103 = scmp.eq.s32.totalorder %s16, 0
    %p104 = por %p102, %p103
    %s106 = sadd.s32 %s105, 1
    %p109 = scmp.eq.s32.totalorder %s10, 1
    %p110 = scmp.ne.s32.totalorder %s105, %s107
    %p111 = scmp.eq.s32.totalorder %s10, 0
    %p112 = por %p110, %p111
    %p113 = scmp.ne.s32.totalorder %s105, %s107
    %p114 = scmp.eq.s32.totalorder %s15, 1
    %p115 = por %p113, %p114
    %p116 = scmp.ne.s32.totalorder %s107, %s108
    %p117 = scmp.eq.s32.totalorder %s15, 0
    %p118 = por %p116, %p117
    %p119 = scmp.ne.s32.totalorder %s107, %s108
    %p120 = scmp.eq.s32.totalorder %s16, 1
    %p121 = por %p119, %p120
    %p123 = scmp.ne.s32.totalorder %s108, %s122
    %p124 = scmp.eq.s32.totalorder %s16, 0
    %p125 = por %p123, %p124
    %s126 = ssub.s32 %s17, %s29
    %s127 = ssub.s32 %s18, %s25
    %s128 = sor.u32 %s126, %s127
    %p129 = scmp.eq.s32.totalorder %s128, 0
    %s131 = sadd.s32 %s130, 1
    %s132 = scalar_select %p129, %s130, %s131
    %p135 = pneg %p129
    %p136 = scmp.eq.s32.totalorder %s10, 1
    %p137 = por %p135, %p136
    %p138 = scmp.ne.s32.totalorder %s130, %s133
    %p139 = scmp.eq.s32.totalorder %s10, 0
    %p140 = por %p138, %p139
    %p141 = scmp.ne.s32.totalorder %s130, %s133
    %p142 = scmp.eq.s32.totalorder %s15, 1
    %p143 = por %p141, %p142
    %p144 = scmp.ne.s32.totalorder %s133, %s134
    %p145 = scmp.eq.s32.totalorder %s15, 0
    %p146 = por %p144, %p145
    %p147 = scmp.ne.s32.totalorder %s133, %s134
    %p148 = scmp.eq.s32.totalorder %s16, 1
    %p149 = por %p147, %p148
    %p151 = scmp.ne.s32.totalorder %s134, %s150
    %p152 = scmp.eq.s32.totalorder %s16, 0
    %p153 = por %p151, %p152
    %p154 = scmp.le.s32.totalorder 1, %s10
    %p155 = scmp.lt.s32.totalorder %s10, 3
    %p156 = pnand %p154, %p155
    %p157 = pneg %p156
    // Predicated region
    $region9: #{line_agc.1} parent=5 // pred_check
      _
    $region10: #{line_agc.1} parent=5 // pred_check_branch
      %159 = sbr.rel (%p156) target = $region12
    $region11: #{line_agc.1} parent=5 // pred_region
      %s160 = ssub.s32 %s10, 1
      // Predicated region
      $region13: #{line_agc.1} parent=11 // pred_check
        %p161 = pneg %p97
      $region14: #{line_agc.1} parent=11 // pred_check_branch
        %163 = sbr.rel (%p161) target = $region16
      $region15: #{line_agc.1} parent=11 // pred_region
        _
      $region16: #{line_agc.1} parent=11 // pred_fallthru
        _
      // Predicated region
      $region17: #{line_agc.1} parent=11 // pred_check
        %p164 = pneg %p118
      $region18: #{line_agc.1} parent=11 // pred_check_branch
        %166 = sbr.rel (%p164) target = $region20
      $region19: #{line_agc.1} parent=11 // pred_region
        _
      $region20: #{line_agc.1} parent=11 // pred_fallthru
        _
    $region12: #{line_agc.1} parent=5 // pred_fallthru
      _
    %p167 = scmp.lt.s32.totalorder %s10, 2
    // Predicated region
    $region21: #{line_agc.1} parent=5 // pred_check
      %p168 = pneg %p167
    $region22: #{line_agc.1} parent=5 // pred_check_branch
      %170 = sbr.rel (%p168) target = $region24
    $region23: #{line_agc.1} parent=5 // pred_region
      // Predicated region
      $region25: #{line_agc.1} parent=23 // pred_check
        %p171 = pneg %p44
      $region26: #{line_agc.1} parent=23 // pred_check_branch
        %173 = sbr.rel (%p171) target = $region28
      $region27: #{line_agc.1} parent=23 // pred_region
        %p174 = scmp.lt.s32.totalorder %s17, 1
        %s175 = scalar_select %p174, %s17, 1
        %p176 = scmp.lt.s32.totalorder %s18, 0
        %s177 = scalar_select %p176, %s18, 0
        %s178 = sadd.s32 %s177, %s175
        %s179 = smul.addr %s178, 8
        %s180 = scalar_lea.vmem %s0, %s179
      $region28: #{line_agc.1} parent=23 // pred_fallthru
        _
      // Predicated region
      $region29: #{line_agc.1} parent=23 // pred_check
        %p181 = pneg %p70
      $region30: #{line_agc.1} parent=23 // pred_check_branch
        %183 = sbr.rel (%p181) target = $region32
      $region31: #{line_agc.1} parent=23 // pred_region
        %p184 = scmp.lt.s32.totalorder %s17, 1
        %s185 = scalar_select %p184, %s17, 1
        %s186 = smul.addr %s185, 8
        %s187 = smul.addr %s186, 8
        %s188 = scalar_lea.vmem %s1, %s187
      $region32: #{line_agc.1} parent=23 // pred_fallthru
        _
    $region24: #{line_agc.1} parent=5 // pred_fallthru
      _
    %p189 = scmp.le.s32.totalorder 1, %s10
    %p190 = scmp.lt.s32.totalorder %s10, 3
    %p191 = pnand %p189, %p190
    %p192 = pneg %p191
    // Predicated region
    $region33: #{line_agc.1} parent=5 // pred_check
      _
    $region34: #{line_agc.1} parent=5 // pred_check_branch
      %194 = sbr.rel (%p191) target = $region36
    $region35: #{line_agc.1} parent=5 // pred_region
      %s195 = ssub.s32 %s10, 1
      %p196 = scmp.lt.s32.totalorder %s19, 1
      %s197 = scalar_select %p196, %s19, 1
      %p198 = scmp.lt.s32.totalorder %s20, 0
      %s199 = scalar_select %p198, %s20, 0
      %s200 = sadd.s32 %s199, %s197
      %s201 = smul.addr %s200, 8
      %s202 = scalar_lea.vmem %s0, %s201
      %p203 = pneg %p50
      %p204 = pneg %p47
      %p205 = scmp.lt.s32.totalorder %s19, 1
      %s206 = scalar_select %p205, %s19, 1
      %s207 = smul.addr %s206, 8
      %s208 = smul.addr %s207, 8
      %s209 = scalar_lea.vmem %s1, %s208
      %p210 = pneg %p76
      %p211 = pneg %p73
      %p212 = pneg %p97
      %p213 = pneg %p94
      %p214 = pneg %p118
      %p215 = pneg %p115
      %p216 = pneg %p146
      %p217 = pneg %p143
      %p218 = scmp.lt.s32.totalorder %s19, 1
      %s219 = scalar_select %p218, %s19, 1
      %p220 = scmp.lt.s32.totalorder %s20, 0
      %s221 = scalar_select %p220, %s20, 0
      %s222 = smul.addr %s221, 4
      %s223 = smul.addr %s219, 4
      %s224 = sadd.s32 %s222, %s223
      %s225 = smul.addr %s224, 8
      %s226 = scalar_lea.vmem %s4, %s225
      %p227 = scmp.lt.s32.totalorder %s19, 1
      %s228 = scalar_select %p227, %s19, 1
      %p229 = scmp.lt.s32.totalorder %s20, 0
      %s230 = scalar_select %p229, %s20, 0
      %s231 = sadd.s32 %s230, %s228
      %s232 = smul.addr %s231, 8
      %s233 = scalar_lea.vmem %s0, %s232
      %p234 = scmp.lt.s32.totalorder %s19, 1
      %s235 = scalar_select %p234, %s19, 1
      %s236 = smul.addr %s235, 8
      %s237 = smul.addr %s236, 8
      %s238 = scalar_lea.vmem %s1, %s237
      %p239 = scmp.lt.s32.totalorder %s19, 1
      %s240 = scalar_select %p239, %s19, 1
      %p241 = scmp.lt.s32.totalorder %s20, 0
      %s242 = scalar_select %p241, %s20, 0
      %s243 = smul.addr %s242, 4
      %s244 = smul.addr %s240, 4
      %s245 = sadd.s32 %s243, %s244
      %s246 = smul.addr %s245, 8
      %s247 = scalar_lea.vmem %s4, %s246
      %v248 = vld [vmem:[%s233] sm:$0xff]
      %v249 = vld [vmem:[%s238] sm:$0xff]
      %v250 = vld [vmem:[%s238 + $0x8] sm:$0xff]
      %v251 = vld [vmem:[%s238 + $0x10] sm:$0xff]
      %v252 = vld [vmem:[%s238 + $0x18] sm:$0xff]
      %v253 = vld [vmem:[%s238 + $0x20] sm:$0xff]
      %v254 = vld [vmem:[%s238 + $0x28] sm:$0xff]
      %v255 = vld [vmem:[%s238 + $0x30] sm:$0xff]
      %v256 = vld [vmem:[%s238 + $0x38] sm:$0xff]
      %vm257 = vcmask 523264
      %v259 = vsel %vm257, %v248, 0
      %261 = vmatpush.msra.mxu0 0.0
      %262 = vmatpush.msra.mxu0 0.0
      %263 = vmatpush.msra.mxu0 0.0
      %264 = vmatpush.msra.mxu0 0.0
      %265 = vmatpush.msra.mxu0 0.0
      %266 = vmatpush.msra.mxu0 0.0
      %267 = vmatpush.msra.mxu0 0.0
      %268 = vmatpush.msra.mxu0 0.0
      %269 = vmatpush.msra.mxu0 %v256
      %270 = vmatpush.msra.mxu0 %v255
      %271 = vmatpush.msra.mxu0 %v254
      %272 = vmatpush.msra.mxu0 %v253
      %273 = vmatpush.msra.mxu0 %v252
      %274 = vmatpush.msra.mxu0 %v251
      %275 = vmatpush.msra.mxu0 %v250
      %276 = vmatpush.msra.mxu0 %v249
      %277 = vmatmul.f32.gmra.mxu0 %v259
      %v278 = vpop.f32.mrf.mxu0
      %v279 = vadd.f32 0.0, %v278
      %280 = vdwg.mxu0
      %v281 = vld [vmem:[%s2] sm:$0xff]
      %v282 = vld [vmem:[%s2 + $0x8] sm:$0xff]
      %v283 = vld [vmem:[%s2 + $0x10] sm:$0xff]
      %v284 = vld [vmem:[%s2 + $0x18] sm:$0xff]
      %v285 = vld [vmem:[%s2 + $0x20] sm:$0xff]
      %v286 = vld [vmem:[%s2 + $0x28] sm:$0xff]
      %v287 = vld [vmem:[%s2 + $0x30] sm:$0xff]
      %v288 = vld [vmem:[%s2 + $0x38] sm:$0xff]
      %v289 = vld [vmem:[%s2 + $0x40] sm:$0xff]
      %v290 = vld [vmem:[%s2 + $0x48] sm:$0xff]
      %v291 = vld [vmem:[%s2 + $0x50] sm:$0xff]
      %v292 = vld [vmem:[%s2 + $0x58] sm:$0xff]
      %v293 = vld [vmem:[%s2 + $0x60] sm:$0xff]
      %v294 = vld [vmem:[%s2 + $0x68] sm:$0xff]
      %v295 = vld [vmem:[%s2 + $0x70] sm:$0xff]
      %v296 = vld [vmem:[%s2 + $0x78] sm:$0xff]
      %v297 = vld [vmem:[%s2 + $0x80] sm:$0xff]
      %v298 = vld [vmem:[%s2 + $0x88] sm:$0xff]
      %v299 = vld [vmem:[%s2 + $0x90] sm:$0xff]
      %v300 = vld [vmem:[%s2 + $0x98] sm:$0xff]
      %v301 = vld [vmem:[%s2 + $0xa0] sm:$0xff]
      %v302 = vld [vmem:[%s2 + $0xa8] sm:$0xff]
      %v303 = vld [vmem:[%s2 + $0xb0] sm:$0xff]
      %v304 = vld [vmem:[%s2 + $0xb8] sm:$0xff]
      %v305 = vld [vmem:[%s2 + $0xc0] sm:$0xff]
      %v306 = vld [vmem:[%s2 + $0xc8] sm:$0xff]
      %v307 = vld [vmem:[%s2 + $0xd0] sm:$0xff]
      %v308 = vld [vmem:[%s2 + $0xd8] sm:$0xff]
      %v309 = vld [vmem:[%s2 + $0xe0] sm:$0xff]
      %v310 = vld [vmem:[%s2 + $0xe8] sm:$0xff]
      %v311 = vld [vmem:[%s2 + $0xf0] sm:$0xff]
      %v312 = vld [vmem:[%s2 + $0xf8] sm:$0xff]
      %v313 = vld [vmem:[%s3] sm:$0xf]
      %v315 = vperm.slane %v313, 0
      %v316 = vperm.slane %v313, 1
      %v317 = vperm.slane %v313, 2
      %v318 = vperm.slane %v313, 3
      %v324 = vsel %vm257, %v279, 0
      %326 = vmatpush.msra.mxu0 0.0
      %327 = vmatpush.msra.mxu0 0.0
      %328 = vmatpush.msra.mxu0 0.0
      %329 = vmatpush.msra.mxu0 0.0
      %330 = vmatpush.msra.mxu0 0.0
      %331 = vmatpush.msra.mxu0 0.0
      %332 = vmatpush.msra.mxu0 0.0
      %333 = vmatpush.msra.mxu0 0.0
      %334 = vmatpush.msra.mxu0 %v309
      %335 = vmatpush.msra.mxu0 %v305
      %336 = vmatpush.msra.mxu0 %v301
      %337 = vmatpush.msra.mxu0 %v297
      %338 = vmatpush.msra.mxu0 %v293
      %339 = vmatpush.msra.mxu0 %v289
      %340 = vmatpush.msra.mxu0 %v285
      %341 = vmatpush.msra.mxu0 %v281
      %342 = vmatmul.f32.gmra.mxu0 %v324
      %v343 = vpop.f32.mrf.mxu0
      %v344 = vadd.f32 %v315, %v343
      %345 = vdwg.mxu0
      %346 = vmatpush.msra.mxu0 0.0
      %347 = vmatpush.msra.mxu0 0.0
      %348 = vmatpush.msra.mxu0 0.0
      %349 = vmatpush.msra.mxu0 0.0
      %350 = vmatpush.msra.mxu0 0.0
      %351 = vmatpush.msra.mxu0 0.0
      %352 = vmatpush.msra.mxu0 0.0
      %353 = vmatpush.msra.mxu0 0.0
      %354 = vmatpush.msra.mxu0 %v310
      %355 = vmatpush.msra.mxu0 %v306
      %356 = vmatpush.msra.mxu0 %v302
      %357 = vmatpush.msra.mxu0 %v298
      %358 = vmatpush.msra.mxu0 %v294
      %359 = vmatpush.msra.mxu0 %v290
      %360 = vmatpush.msra.mxu0 %v286
      %361 = vmatpush.msra.mxu0 %v282
      %362 = vmatmul.f32.gmra.mxu0 %v324
      %v363 = vpop.f32.mrf.mxu0
      %v364 = vadd.f32 %v316, %v363
      %365 = vdwg.mxu0
      %366 = vmatpush.msra.mxu0 0.0
      %367 = vmatpush.msra.mxu0 0.0
      %368 = vmatpush.msra.mxu0 0.0
      %369 = vmatpush.msra.mxu0 0.0
      %370 = vmatpush.msra.mxu0 0.0
      %371 = vmatpush.msra.mxu0 0.0
      %372 = vmatpush.msra.mxu0 0.0
      %373 = vmatpush.msra.mxu0 0.0
      %374 = vmatpush.msra.mxu0 %v311
      %375 = vmatpush.msra.mxu0 %v307
      %376 = vmatpush.msra.mxu0 %v303
      %377 = vmatpush.msra.mxu0 %v299
      %378 = vmatpush.msra.mxu0 %v295
      %379 = vmatpush.msra.mxu0 %v291
      %380 = vmatpush.msra.mxu0 %v287
      %381 = vmatpush.msra.mxu0 %v283
      %382 = vmatmul.f32.gmra.mxu0 %v324
      %v383 = vpop.f32.mrf.mxu0
      %v384 = vadd.f32 %v317, %v383
      %385 = vdwg.mxu0
      %386 = vmatpush.msra.mxu0 0.0
      %387 = vmatpush.msra.mxu0 0.0
      %388 = vmatpush.msra.mxu0 0.0
      %389 = vmatpush.msra.mxu0 0.0
      %390 = vmatpush.msra.mxu0 0.0
      %391 = vmatpush.msra.mxu0 0.0
      %392 = vmatpush.msra.mxu0 0.0
      %393 = vmatpush.msra.mxu0 0.0
      %394 = vmatpush.msra.mxu0 %v312
      %395 = vmatpush.msra.mxu0 %v308
      %396 = vmatpush.msra.mxu0 %v304
      %397 = vmatpush.msra.mxu0 %v300
      %398 = vmatpush.msra.mxu0 %v296
      %399 = vmatpush.msra.mxu0 %v292
      %400 = vmatpush.msra.mxu0 %v288
      %401 = vmatpush.msra.mxu0 %v284
      %402 = vmatmul.f32.gmra.mxu0 %v324
      %v403 = vpop.f32.mrf.mxu0
      %v404 = vadd.f32 %v318, %v403
      %405 = vdwg.mxu0
      %v406 = vmax.f32 %v344, 0.0
      %v407 = vmax.f32 %v364, 0.0
      %v408 = vmax.f32 %v384, 0.0
      %v409 = vmax.f32 %v404, 0.0
      %410 = vst [vmem:[%s247] sm:$0xff] %v406
      %411 = vst [vmem:[%s247 + $0x8] sm:$0xff] %v407
      %412 = vst [vmem:[%s247 + $0x10] sm:$0xff] %v408
      %413 = vst [vmem:[%s247 + $0x18] sm:$0xff] %v409
      %p414 = scmp.lt.s32.totalorder %s19, 1
      %s415 = scalar_select %p414, %s19, 1
      %p416 = scmp.lt.s32.totalorder %s20, 0
      %s417 = scalar_select %p416, %s20, 0
      %s418 = smul.addr %s417, 4
      %s419 = smul.addr %s415, 4
      %s420 = sadd.s32 %s418, %s419
      %s421 = smul.addr %s420, 8
      %s422 = scalar_lea.vmem %s4, %s421
      // Predicated region
      $region37: #{line_agc.1} parent=35 // pred_check
        %p423 = pneg %p143
      $region38: #{line_agc.1} parent=35 // pred_check_branch
        %425 = sbr.rel (%p423) target = $region40
      $region39: #{line_agc.1} parent=35 // pred_region
        _
      $region40: #{line_agc.1} parent=35 // pred_fallthru
        _
    $region36: #{line_agc.1} parent=5 // pred_fallthru
      _
    %p426 = scmp.le.s32.totalorder 2, %s10
    // Predicated region
    $region41: #{line_agc.1} parent=5 // pred_check
      %p427 = pneg %p426
    $region42: #{line_agc.1} parent=5 // pred_check_branch
      %429 = sbr.rel (%p427) target = $region44
    $region43: #{line_agc.1} parent=5 // pred_region
      %s430 = ssub.s32 %s10, 2
      // Predicated region
      $region45: #{line_agc.1} parent=43 // pred_check
        %p431 = pneg %p149
      $region46: #{line_agc.1} parent=43 // pred_check_branch
        %433 = sbr.rel (%p431) target = $region48
      $region47: #{line_agc.1} parent=43 // pred_region
        %p434 = scmp.lt.s32.totalorder %s21, 1
        %s435 = scalar_select %p434, %s21, 1
        %p436 = scmp.lt.s32.totalorder %s22, 0
        %s437 = scalar_select %p436, %s22, 0
        %s438 = smul.addr %s437, 4
        %s439 = smul.addr %s435, 4
        %s440 = sadd.s32 %s438, %s439
        %s441 = smul.addr %s440, 8
        %s442 = scalar_lea.vmem %s4, %s441
      $region48: #{line_agc.1} parent=43 // pred_fallthru
        _
    $region44: #{line_agc.1} parent=5 // pred_fallthru
      _
  $region6: #{line_agc.1} parent=0 // loop_footer
    %s14 = sadd.s32 1, %s10
  $region7: #{line_agc.1} parent=0 // loop_footer_branch
    %9 = sbr.rel target = $region3
  $region8: #{line_agc.1} parent=0 // loop_exit
    _

</llo_original>
